<compile_context>
chip_gen: v7x
topology: tpu7x:2x2x1
jax: 0.10.0
libtpu: 0.0.40
codegen_flags: <defaults>
</compile_context>

<pallas_src>
import jax
import jax.numpy as jnp
from jax.experimental import pallas as pl
from jax.experimental.pallas import tpu as pltpu

_LANE = 128
_SUBLANE = 8
_TARGET_STREAM_BYTES = 2 << 20   # ~2 MiB per x/out block (per buffer)
_VMEM_BUDGET_BYTES = 20 << 20    # total double-buffered footprint target (safe on v5e..v7x)
_MIN_GRID_STEPS = 8              # keep both v7x TensorCores + the pipeline fed


def _round_up(x, m):
    return -(-x // m) * m


def _freq_filter_kernel(filt_ref, xr_ref, xi_ref, or_ref, oi_ref):
    # Pure VPU elementwise work on lane-dense tiles.  The real filter block
    # broadcasts over the leading (batch) dims of the x blocks.
    f = filt_ref[...]
    or_ref[...] = f * xr_ref[...]
    oi_ref[...] = f * xi_ref[...]


def _pick_lane_block(total_lanes, stream_bytes_per_lane, all_bytes_per_lane, min_blocks):
    """Lane-dim block width: a multiple of 128, or the full dim when < 128.

    stream_bytes_per_lane / all_bytes_per_lane are *sublane-padded* VMEM bytes
    per lane for one x/out block resp. all blocks of one pipeline stage.
    """
    if total_lanes <= _LANE:
        return total_lanes                       # full dim (pads to one lane tile)
    cap_stream = _TARGET_STREAM_BYTES // stream_bytes_per_lane
    cap_vmem = _VMEM_BUDGET_BYTES // (2 * all_bytes_per_lane)   # 2 = double buffering
    cap_split = -(-total_lanes // max(min_blocks, 1))            # keep >= min_blocks steps
    blk = min(cap_stream, cap_vmem, cap_split, total_lanes)
    return max(_LANE, (blk // _LANE) * _LANE)


def learnable_frequency_filter(filter_weight, x_real, x_imag):
    """Apply the learnable frequency-domain filter.

    filter_weight: (1, C, H, W) float32
    x_real, x_imag: (B, C, H, W) float32 (real / imag parts of x_fft)
    returns: (out_real, out_imag), each (B, C, H, W) float32
    """
    B, C, H, W = x_real.shape
    assert filter_weight.shape == (1, C, H, W)
    assert x_imag.shape == x_real.shape
    dtype = x_real.dtype
    HW = H * W
    F = C * HW
    C_eff = _round_up(C, _SUBLANE)

    # Layout choice: put whichever of {C, B} wastes fewer sublanes of the
    # physical (8, 128) tile on the sublane axis of the block.
    frac_folded = C / C_eff                                   # sublane dim = C
    b_for_flat = min(B, 4096)
    frac_flat = b_for_flat / _round_up(b_for_flat, _SUBLANE)  # sublane dim = B (row block)
    use_folded = frac_folded > frac_flat

    if use_folded:
        # x viewed as (B, C, H*W); filter as (C, H*W).  Contiguous reshapes.
        xr = x_real.reshape(B, C, HW)
        xi = x_imag.reshape(B, C, HW)
        fw = filter_weight.reshape(C, HW)

        # Split batch across a grid axis only if one batch slab already exceeds
        # the per-stream target at the minimum (128) lane width.
        b_cap = max(1, _TARGET_STREAM_BYTES // (C_eff * _LANE * 4))
        b_blk = min(B, b_cap)
        n_bb = pl.cdiv(B, b_blk)
        rows_eff = b_blk * C_eff
        filt_rows_eff = C_eff

        min_lane_blocks = max(1, -(-_MIN_GRID_STEPS // n_bb))
        lane_blk = _pick_lane_block(
            HW, rows_eff * 4, (4 * rows_eff + filt_rows_eff) * 4, min_lane_blocks)
        n_lb = pl.cdiv(HW, lane_blk)

        grid = (n_bb, n_lb)
        x_spec = pl.BlockSpec((b_blk, C, lane_blk), lambda i, j: (i, 0, j))
        f_spec = pl.BlockSpec((C, lane_blk), lambda i, j: (0, j))
        out_struct = jax.ShapeDtypeStruct((B, C, HW), dtype)
        args = (fw, xr, xi)
    else:
        # x viewed as (B, C*H*W); filter as (1, C*H*W).  Contiguous reshapes.
        xr = x_real.reshape(B, F)
        xi = x_imag.reshape(B, F)
        fw = filter_weight.reshape(1, F)

        row_cap = max(_SUBLANE,
                      (_TARGET_STREAM_BYTES // (_LANE * 4)) // _SUBLANE * _SUBLANE)
        row_blk = B if B <= row_cap else row_cap   # full dim, or a multiple of 8
        n_rb = pl.cdiv(B, row_blk)
        rows_eff = _round_up(row_blk, _SUBLANE)
        filt_rows_eff = _SUBLANE                   # (1, blk) filter pads to 8 sublanes

        min_lane_blocks = max(1, -(-_MIN_GRID_STEPS // n_rb))
        lane_blk = _pick_lane_block(
            F, rows_eff * 4, (4 * rows_eff + filt_rows_eff) * 4, min_lane_blocks)
        n_lb = pl.cdiv(F, lane_blk)

        grid = (n_rb, n_lb)
        x_spec = pl.BlockSpec((row_blk, lane_blk), lambda i, j: (i, j))
        f_spec = pl.BlockSpec((1, lane_blk), lambda i, j: (0, j))
        out_struct = jax.ShapeDtypeStruct((B, F), dtype)
        args = (fw, xr, xi)

    # Real (padded, double-buffered) VMEM footprint -> explicit scoped limit.
    lane_blk_eff = max(_LANE, _round_up(lane_blk, _LANE))
    x_block_bytes = rows_eff * lane_blk_eff * 4
    f_block_bytes = filt_rows_eff * lane_blk_eff * 4
    footprint = 2 * (4 * x_block_bytes + f_block_bytes)
    vmem_limit = int(min(48 << 20,
                         max(footprint + footprint // 4 + (2 << 20), 8 << 20)))

    # Advisory cost for the XLA scheduler (mem-bound op).
    flops = 2 * B * F
    bytes_accessed = 4 * (4 * B * F + F * grid[0])

    out_r, out_i = pl.pallas_call(
        _freq_filter_kernel,
        out_shape=(out_struct, out_struct),
        grid_spec=pltpu.PrefetchScalarGridSpec(
            num_scalar_prefetch=0,
            grid=grid,
            in_specs=[f_spec, x_spec, x_spec],
            out_specs=(x_spec, x_spec),
        ),
        compiler_params=pltpu.CompilerParams(
            dimension_semantics=("parallel",) * len(grid),
            vmem_limit_bytes=vmem_limit,
        ),
        cost_estimate=pl.CostEstimate(
            flops=flops, transcendentals=0, bytes_accessed=int(bytes_accessed)),
    )(*args)

    # Contiguous reshapes back to NCHW (free, no copies / slicing).
    return out_r.reshape(B, C, H, W), out_i.reshape(B, C, H, W)


def make_lowpass_filter_weight(in_channels, H, W, cutoff_ratio=0.3):
    """Deterministic init replicating LearnableFrequencyFilter('lowpass')."""
    y, x = jnp.meshgrid(jnp.arange(H, dtype=jnp.float32),
                        jnp.arange(W, dtype=jnp.float32), indexing="ij")
    center_x, center_y = W // 2, H // 2
    radius = cutoff_ratio * min(H, W)
    dist = jnp.sqrt((x - center_x) ** 2 + (y - center_y) ** 2)
    lowpass = jnp.exp(-dist ** 2 / (2.0 * (radius / 3.0) ** 2))
    return jnp.tile(lowpass[None, None, :, :], (1, in_channels, 1, 1))


if __name__ == "__main__":
    B, C, H, W = 2, 4, 16, 16

    key = jax.random.PRNGKey(0)
    kr, ki = jax.random.split(key)
    x_real = jax.random.normal(kr, (B, C, H, W), dtype=jnp.float32)
    x_imag = jax.random.normal(ki, (B, C, H, W), dtype=jnp.float32)

    filter_weight = make_lowpass_filter_weight(C, H, W)  # deterministic param init

    out_real, out_imag = learnable_frequency_filter(filter_weight, x_real, x_imag)
    out_real, out_imag = jax.block_until_ready((out_real, out_imag))

    # Reference: complex broadcast-multiply in plain JAX.
    x_fft = x_real + 1j * x_imag
    ref = filter_weight.astype(jnp.complex64) * x_fft
    assert jnp.allclose(out_real, jnp.real(ref), atol=1e-6)
    assert jnp.allclose(out_imag, jnp.imag(ref), atol=1e-6)

    print("KERNEL_OK")
</pallas_src>

<mosaic_0001>
module attributes {stable_mosaic.version = 11 : i64} {
  func.func @_freq_filter_kernel(%arg0: i32, %arg1: i32, %arg2: memref<4x128xf32, #tpu.memory_space<vmem>>, %arg3: memref<2x4x128xf32, #tpu.memory_space<vmem>>, %arg4: memref<2x4x128xf32, #tpu.memory_space<vmem>>, %arg5: memref<2x4x128xf32, #tpu.memory_space<vmem>>, %arg6: memref<2x4x128xf32, #tpu.memory_space<vmem>>) attributes {dimension_semantics = [#tpu.dimension_semantics<parallel>, #tpu.dimension_semantics<parallel>], iteration_bounds = array<i64: 1, 2>, scalar_prefetch = 0 : i64, scratch_operands = 0 : i64, tpu.core_type = #tpu.core_type<tc>, window_params = [{transform_indices = @transform_0, window_bounds = array<i64: 4, 128>}, {transform_indices = @transform_1, window_bounds = array<i64: 2, 4, 128>}, {transform_indices = @transform_2, window_bounds = array<i64: 2, 4, 128>}, {transform_indices = @transform_3, window_bounds = array<i64: 2, 4, 128>}, {transform_indices = @transform_4, window_bounds = array<i64: 2, 4, 128>}]} {
    %c0 = arith.constant 0 : index
    %c0_0 = arith.constant 0 : index
    %0 = vector.load %arg2[%c0, %c0_0] : memref<4x128xf32, #tpu.memory_space<vmem>>, vector<4x128xf32>
    %c0_1 = arith.constant 0 : index
    %c0_2 = arith.constant 0 : index
    %c0_3 = arith.constant 0 : index
    %1 = vector.load %arg3[%c0_1, %c0_2, %c0_3] : memref<2x4x128xf32, #tpu.memory_space<vmem>>, vector<2x4x128xf32>
    %2 = vector.shape_cast %0 : vector<4x128xf32> to vector<1x4x128xf32>
    %3 = vector.broadcast %2 : vector<1x4x128xf32> to vector<2x4x128xf32>
    %4 = arith.mulf %3, %1 : vector<2x4x128xf32>
    %c0_4 = arith.constant 0 : index
    %c0_5 = arith.constant 0 : index
    %c0_6 = arith.constant 0 : index
    %5 = vector.load %arg5[%c0_4, %c0_5, %c0_6] : memref<2x4x128xf32, #tpu.memory_space<vmem>>, vector<2x4x128xf32>
    tpu.vector_store %arg5[%c0_4, %c0_5, %c0_6], %4 {strides = array<i32>} : memref<2x4x128xf32, #tpu.memory_space<vmem>>, vector<2x4x128xf32>,
    %c0_7 = arith.constant 0 : index
    %c0_8 = arith.constant 0 : index
    %c0_9 = arith.constant 0 : index
    %6 = vector.load %arg4[%c0_7, %c0_8, %c0_9] : memref<2x4x128xf32, #tpu.memory_space<vmem>>, vector<2x4x128xf32>
    %7 = vector.shape_cast %0 : vector<4x128xf32> to vector<1x4x128xf32>
    %8 = vector.broadcast %7 : vector<1x4x128xf32> to vector<2x4x128xf32>
    %9 = arith.mulf %8, %6 : vector<2x4x128xf32>
    %c0_10 = arith.constant 0 : index
    %c0_11 = arith.constant 0 : index
    %c0_12 = arith.constant 0 : index
    %10 = vector.load %arg6[%c0_10, %c0_11, %c0_12] : memref<2x4x128xf32, #tpu.memory_space<vmem>>, vector<2x4x128xf32>
    tpu.vector_store %arg6[%c0_10, %c0_11, %c0_12], %9 {strides = array<i32>} : memref<2x4x128xf32, #tpu.memory_space<vmem>>, vector<2x4x128xf32>,
    return
  }
  func.func @transform_0(%arg0: i32, %arg1: i32) -> (i32, i32) {
    %c0_i32 = arith.constant 0 : i32
    %c0_i32_0 = arith.constant 0 : i32
    return %c0_i32, %arg1 : i32, i32
  }
  func.func @transform_1(%arg0: i32, %arg1: i32) -> (i32, i32, i32) {
    %c0_i32 = arith.constant 0 : i32
    %c0_i32_0 = arith.constant 0 : i32
    return %arg0, %c0_i32, %arg1 : i32, i32, i32
  }
  func.func @transform_2(%arg0: i32, %arg1: i32) -> (i32, i32, i32) {
    %c0_i32 = arith.constant 0 : i32
    %c0_i32_0 = arith.constant 0 : i32
    return %arg0, %c0_i32, %arg1 : i32, i32, i32
  }
  func.func @transform_3(%arg0: i32, %arg1: i32) -> (i32, i32, i32) {
    %c0_i32 = arith.constant 0 : i32
    %c0_i32_0 = arith.constant 0 : i32
    return %arg0, %c0_i32, %arg1 : i32, i32, i32
  }
  func.func @transform_4(%arg0: i32, %arg1: i32) -> (i32, i32, i32) {
    %c0_i32 = arith.constant 0 : i32
    %c0_i32_0 = arith.constant 0 : i32
    return %arg0, %c0_i32, %arg1 : i32, i32, i32
  }
}

</mosaic_0001>

<llo_original>
// kernel: tpu_custom_call.1
$region0: #{tpu_custom_call.1}
  #allocation0 [shape = 'u32[]', space=smem, size = 0x4, offset = 0x4, fixed_abs, tag = 'smem constant byte address 0x4 - core index']
  #allocation1 [shape = 'u32[144,128]{1,0:T(1,128)}', space=vmem, size = 0x12000, scoped, tag = 'internal scratch']
  %s0 = inlined_call_operand.hbm [shape: f32[4,256], index: 0, kind: input, shape index: {}]
  %s1 = inlined_call_operand.hbm [shape: f32[2,4,256], index: 1, kind: input, shape index: {}]
  %s2 = inlined_call_operand.hbm [shape: f32[2,4,256], index: 2, kind: input, shape index: {}]
  %s3 = inlined_call_operand.hbm [shape: f32[2,4,256], index: 3, kind: output, shape index: {0}]
  %s4 = inlined_call_operand.hbm [shape: f32[2,4,256], index: 4, kind: output, shape index: {1}]
  %5 = xla_tuple %s3, %s4
  %s6 = sld [smem:[#allocation0]]
  $region65: #{tpu_custom_call.1} parent=0
    _
  %s8 = ssub.s32 1, %s6
  %s9 = scalar_select 0, %s8, %s6
  $region1: #{tpu_custom_call.1} parent=0
    #allocation2 [shape = 'u8[4096]{0}', space=vmem, size = 0x1000, scoped, tag = 'input window, operand 0']
    #allocation3 [shape = 's32[2]{0}', space=sflag, size = 0x8, scoped, tag = 'scoped memory for tpu_custom_call.1']
    #allocation4 [shape = 's32[2]{0}', space=sflag, size = 0x8, scoped, tag = 'scoped memory for tpu_custom_call.1']
    #allocation5 [shape = 'u8[8192]{0}', space=vmem, size = 0x2000, scoped, tag = 'input window, operand 1']
    #allocation6 [shape = 's32[2]{0}', space=sflag, size = 0x8, scoped, tag = 'scoped memory for tpu_custom_call.1']
    #allocation7 [shape = 'u8[8192]{0}', space=vmem, size = 0x2000, scoped, tag = 'input window, operand 2']
    #allocation8 [shape = 'u8[8192]{0}', space=vmem, size = 0x2000, scoped, tag = 'output window, operand 0']
    #allocation9 [shape = 'u8[8192]{0}', space=vmem, size = 0x2000, scoped, tag = 'output window, operand 1']
    #allocation10 [shape = 's32[2]{0}', space=sflag, size = 0x8, scoped, tag = 'scoped memory for tpu_custom_call.1']
    %10 = vsyncpa [#allocation3], 0
    %s11 = scalar_lea.sflag [#allocation3], 1
    %12 = vsyncpa %s11, 0
    %13 = vsyncpa [#allocation6], 0
    %s14 = scalar_lea.sflag [#allocation6], 1
    %15 = vsyncpa %s14, 0
    %16 = vsyncpa [#allocation4], 0
    %s17 = scalar_lea.sflag [#allocation4], 1
    %18 = vsyncpa %s17, 0
    %19 = vsyncpa [#allocation10], 0
    %s20 = scalar_lea.sflag [#allocation10], 1
    %21 = vsyncpa %s20, 0
    loop: start=0, step=1, limit=4
    $region2: #{tpu_custom_call.1} parent=1 // loop_pre_header
      _
    $region3: #{tpu_custom_call.1} parent=1 // loop_header
      %s23 = sphi 0, %s27
      %p24 = scmp.ge.s32.totalorder %s23, 4
      %s30 = sphi 0, %s42
      %s31 = sphi 0, %s38
      %s32 = sphi 0, %s30
      %s33 = sphi 0, %s31
      %s34 = sphi 0, %s32
      %s35 = sphi 0, %s33
      %s45 = sphi 0, %s47
      %s48 = sphi 0, %s45
      %s49 = sphi 0, %s48
      %s65 = sphi 0, %s49
      %s73 = sphi 0, %s75
      %s76 = sphi 0, %s73
      %s77 = sphi 0, %s76
      %s93 = sphi 0, %s77
      %s101 = sphi 0, %s103
      %s104 = sphi 0, %s101
      %s105 = sphi 0, %s104
      %s121 = sphi 0, %s105
      %s129 = sphi 0, %s131
      %s132 = sphi 0, %s129
      %s133 = sphi 0, %s132
      %s149 = sphi 0, %s133
      %s157 = sphi 0, %s159
      %s160 = sphi 0, %s157
      %s161 = sphi 0, %s160
      %s177 = sphi 0, %s161
    $region4: #{tpu_custom_call.1} parent=1 // loop_header_branch
      %26 = sbr.rel (%p24) target = $region8
    $region5: #{tpu_custom_call.1} parent=1 // loop_body
      %s28 = ssub.s32 %s23, 1
      %s29 = ssub.s32 %s23, 2
      %s36 = sadd.s32 1, %s31
      %p37 = scmp.ge.s32.totalorder %s36, 2
      %s38 = scalar_select %p37, 0, %s36
      %s39 = sadd.s32 1, %s30
      %s40 = scalar_select %p37, %s39, %s30
      %p41 = scmp.ge.s32.totalorder %s40, 1
      %s42 = scalar_select %p41, 0, %s40
      %s43 = ssub.s32 %s31, %s38
      %p44 = scmp.eq.s32.totalorder %s43, 0
      %s46 = sadd.s32 %s45, 1
      %s47 = scalar_select %p44, %s45, %s46
      %p50 = pneg %p44
      %p51 = scmp.eq.s32.totalorder %s23, 1
      %p52 = por %p50, %p51
      %p53 = scmp.ne.s32.totalorder %s45, %s48
      %p54 = scmp.eq.s32.totalorder %s23, 0
      %p55 = por %p53, %p54
      %p56 = scmp.ne.s32.totalorder %s45, %s48
      %p57 = scmp.eq.s32.totalorder %s28, 1
      %p58 = por %p56, %p57
      %p59 = scmp.ne.s32.totalorder %s48, %s49
      %p60 = scmp.eq.s32.totalorder %s28, 0
      %p61 = por %p59, %p60
      %p62 = scmp.ne.s32.totalorder %s48, %s49
      %p63 = scmp.eq.s32.totalorder %s29, 1
      %p64 = por %p62, %p63
      %p66 = scmp.ne.s32.totalorder %s49, %s65
      %p67 = scmp.eq.s32.totalorder %s29, 0
      %p68 = por %p66, %p67
      %s69 = ssub.s32 %s30, %s42
      %s70 = ssub.s32 %s31, %s38
      %s71 = sor.u32 %s69, %s70
      %p72 = scmp.eq.s32.totalorder %s71, 0
      %s74 = sadd.s32 %s73, 1
      %s75 = scalar_select %p72, %s73, %s74
      %p78 = pneg %p72
      %p79 = scmp.eq.s32.totalorder %s23, 1
      %p80 = por %p78, %p79
      %p81 = scmp.ne.s32.totalorder %s73, %s76
      %p82 = scmp.eq.s32.totalorder %s23, 0
      %p83 = por %p81, %p82
      %p84 = scmp.ne.s32.totalorder %s73, %s76
      %p85 = scmp.eq.s32.totalorder %s28, 1
      %p86 = por %p84, %p85
      %p87 = scmp.ne.s32.totalorder %s76, %s77
      %p88 = scmp.eq.s32.totalorder %s28, 0
      %p89 = por %p87, %p88
      %p90 = scmp.ne.s32.totalorder %s76, %s77
      %p91 = scmp.eq.s32.totalorder %s29, 1
      %p92 = por %p90, %p91
      %p94 = scmp.ne.s32.totalorder %s77, %s93
      %p95 = scmp.eq.s32.totalorder %s29, 0
      %p96 = por %p94, %p95
      %s97 = ssub.s32 %s30, %s42
      %s98 = ssub.s32 %s31, %s38
      %s99 = sor.u32 %s97, %s98
      %p100 = scmp.eq.s32.totalorder %s99, 0
      %s102 = sadd.s32 %s101, 1
      %s103 = scalar_select %p100, %s101, %s102
      %p106 = pneg %p100
      %p107 = scmp.eq.s32.totalorder %s23, 1
      %p108 = por %p106, %p107
      %p109 = scmp.ne.s32.totalorder %s101, %s104
      %p110 = scmp.eq.s32.totalorder %s23, 0
      %p111 = por %p109, %p110
      %p112 = scmp.ne.s32.totalorder %s101, %s104
      %p113 = scmp.eq.s32.totalorder %s28, 1
      %p114 = por %p112, %p113
      %p115 = scmp.ne.s32.totalorder %s104, %s105
      %p116 = scmp.eq.s32.totalorder %s28, 0
      %p117 = por %p115, %p116
      %p118 = scmp.ne.s32.totalorder %s104, %s105
      %p119 = scmp.eq.s32.totalorder %s29, 1
      %p120 = por %p118, %p119
      %p122 = scmp.ne.s32.totalorder %s105, %s121
      %p123 = scmp.eq.s32.totalorder %s29, 0
      %p124 = por %p122, %p123
      %s125 = ssub.s32 %s30, %s42
      %s126 = ssub.s32 %s31, %s38
      %s127 = sor.u32 %s125, %s126
      %p128 = scmp.eq.s32.totalorder %s127, 0
      %s130 = sadd.s32 %s129, 1
      %s131 = scalar_select %p128, %s129, %s130
      %p134 = pneg %p128
      %p135 = scmp.eq.s32.totalorder %s23, 1
      %p136 = por %p134, %p135
      %p137 = scmp.ne.s32.totalorder %s129, %s132
      %p138 = scmp.eq.s32.totalorder %s23, 0
      %p139 = por %p137, %p138
      %p140 = scmp.ne.s32.totalorder %s129, %s132
      %p141 = scmp.eq.s32.totalorder %s28, 1
      %p142 = por %p140, %p141
      %p143 = scmp.ne.s32.totalorder %s132, %s133
      %p144 = scmp.eq.s32.totalorder %s28, 0
      %p145 = por %p143, %p144
      %p146 = scmp.ne.s32.totalorder %s132, %s133
      %p147 = scmp.eq.s32.totalorder %s29, 1
      %p148 = por %p146, %p147
      %p150 = scmp.ne.s32.totalorder %s133, %s149
      %p151 = scmp.eq.s32.totalorder %s29, 0
      %p152 = por %p150, %p151
      %s153 = ssub.s32 %s30, %s42
      %s154 = ssub.s32 %s31, %s38
      %s155 = sor.u32 %s153, %s154
      %p156 = scmp.eq.s32.totalorder %s155, 0
      %s158 = sadd.s32 %s157, 1
      %s159 = scalar_select %p156, %s157, %s158
      %p162 = pneg %p156
      %p163 = scmp.eq.s32.totalorder %s23, 1
      %p164 = por %p162, %p163
      %p165 = scmp.ne.s32.totalorder %s157, %s160
      %p166 = scmp.eq.s32.totalorder %s23, 0
      %p167 = por %p165, %p166
      %p168 = scmp.ne.s32.totalorder %s157, %s160
      %p169 = scmp.eq.s32.totalorder %s28, 1
      %p170 = por %p168, %p169
      %p171 = scmp.ne.s32.totalorder %s160, %s161
      %p172 = scmp.eq.s32.totalorder %s28, 0
      %p173 = por %p171, %p172
      %p174 = scmp.ne.s32.totalorder %s160, %s161
      %p175 = scmp.eq.s32.totalorder %s29, 1
      %p176 = por %p174, %p175
      %p178 = scmp.ne.s32.totalorder %s161, %s177
      %p179 = scmp.eq.s32.totalorder %s29, 0
      %p180 = por %p178, %p179
      %p181 = scmp.le.s32.totalorder 1, %s23
      %p182 = scmp.lt.s32.totalorder %s23, 3
      %p183 = pnand %p181, %p182
      %p184 = pneg %p183
      // Predicated region
      $region9: #{tpu_custom_call.1} parent=5 // pred_check
        _
      $region10: #{tpu_custom_call.1} parent=5 // pred_check_branch
        %186 = sbr.rel (%p183) target = $region12
      $region11: #{tpu_custom_call.1} parent=5 // pred_region
        %s187 = ssub.s32 %s23, 1
      $region12: #{tpu_custom_call.1} parent=5 // pred_fallthru
        _
      %p188 = scmp.lt.s32.totalorder %s23, 2
      // Predicated region
      $region13: #{tpu_custom_call.1} parent=5 // pred_check
        %p189 = pneg %p188
      $region14: #{tpu_custom_call.1} parent=5 // pred_check_branch
        %191 = sbr.rel (%p189) target = $region16
      $region15: #{tpu_custom_call.1} parent=5 // pred_region
        // Predicated region
        $region17: #{tpu_custom_call.1} parent=15 // pred_check
          %p192 = pneg %p55
        $region18: #{tpu_custom_call.1} parent=15 // pred_check_branch
          %194 = sbr.rel (%p192) target = $region20
        $region19: #{tpu_custom_call.1} parent=15 // pred_region
          %s195 = sand.u32 %s45, 1
          %s196 = scalar_lea.sflag [#allocation3], %s195
          %s197 = sand.u32 %s45, 1
          %s198 = smul.addr %s197, 4
          %s199 = scalar_lea.vmem [#allocation2], %s198
          %s201 = ssub.s32 64, 64
          %202 = vsyncadd %s196, %s201
          %s203 = smul.addr %s31, 64
          %s204 = scalar_lea.hbm %s0, %s203
          %s206 = sshll.u32 %s199, 4
          %s207 = int_to_ptr.vmem [resolvable:$true] %s206
          %209 = dma.hbm_to_vmem [thread:$0]  %s204, 64, %s207, %s196
        $region20: #{tpu_custom_call.1} parent=15 // pred_fallthru
          _
        // Predicated region
        $region21: #{tpu_custom_call.1} parent=15 // pred_check
          %p210 = pneg %p83
        $region22: #{tpu_custom_call.1} parent=15 // pred_check_branch
          %212 = sbr.rel (%p210) target = $region24
        $region23: #{tpu_custom_call.1} parent=15 // pred_region
          %s213 = sand.u32 %s23, 1
          %s214 = scalar_lea.sflag [#allocation6], %s213
          %s215 = sand.u32 %s73, 1
          %s216 = smul.addr %s215, 8
          %s217 = scalar_lea.vmem [#allocation5], %s216
          %s218 = smul.u32 2, %s30
          %s220 = ssub.s32 128, 128
          %221 = vsyncadd %s214, %s220
          %s222 = smul.addr %s218, 2
          %s223 = sadd.s32 %s31, %s222
          %s224 = smul.addr %s223, 64
          %s225 = scalar_lea.hbm %s1, %s224
          %s226 = sshll.u32 %s217, 4
          %s227 = int_to_ptr.vmem [resolvable:$true] %s226
          %232 = dma.hbm_to_vmem [thread:$0]  %s225, 128, %s227, %s214, 128, 64, 4
        $region24: #{tpu_custom_call.1} parent=15 // pred_fallthru
          _
        // Predicated region
        $region25: #{tpu_custom_call.1} parent=15 // pred_check
          %p233 = pneg %p111
        $region26: #{tpu_custom_call.1} parent=15 // pred_check_branch
          %235 = sbr.rel (%p233) target = $region28
        $region27: #{tpu_custom_call.1} parent=15 // pred_region
          %s236 = sand.u32 %s23, 1
          %s237 = scalar_lea.sflag [#allocation6], %s236
          %s238 = sand.u32 %s101, 1
          %s239 = smul.addr %s238, 8
          %s240 = scalar_lea.vmem [#allocation7], %s239
          %s241 = smul.u32 2, %s30
          %s243 = ssub.s32 128, 128
          %244 = vsyncadd %s237, %s243
          %s245 = smul.addr %s241, 2
          %s246 = sadd.s32 %s31, %s245
          %s247 = smul.addr %s246, 64
          %s248 = scalar_lea.hbm %s2, %s247
          %s249 = sshll.u32 %s240, 4
          %s250 = int_to_ptr.vmem [resolvable:$true] %s249
          %255 = dma.hbm_to_vmem [thread:$0]  %s248, 128, %s250, %s237, 128, 64, 4
        $region28: #{tpu_custom_call.1} parent=15 // pred_fallthru
          _
      $region16: #{tpu_custom_call.1} parent=5 // pred_fallthru
        _
      %p256 = scmp.le.s32.totalorder 1, %s23
      %p257 = scmp.lt.s32.totalorder %s23, 3
      %p258 = pnand %p256, %p257
      %p259 = pneg %p258
      // Predicated region
      $region29: #{tpu_custom_call.1} parent=5 // pred_check
        _
      $region30: #{tpu_custom_call.1} parent=5 // pred_check_branch
        %261 = sbr.rel (%p258) target = $region32
      $region31: #{tpu_custom_call.1} parent=5 // pred_region
        %s262 = ssub.s32 %s23, 1
        %s263 = sand.u32 %s48, 1
        %s264 = scalar_lea.sflag [#allocation3], %s263
        %s265 = sand.u32 %s48, 1
        %s266 = smul.addr %s265, 4
        %s267 = scalar_lea.vmem [#allocation2], %s266
        // Predicated region
        $region33: #{tpu_custom_call.1} parent=31 // pred_check
          %p268 = pneg %p61
        $region34: #{tpu_custom_call.1} parent=31 // pred_check_branch
          %270 = sbr.rel (%p268) target = $region36
        $region35: #{tpu_custom_call.1} parent=31 // pred_region
          %271 = dma.done %s264, 64
        $region36: #{tpu_custom_call.1} parent=31 // pred_fallthru
          _
        %s272 = sand.u32 %s28, 1
        %s273 = scalar_lea.sflag [#allocation6], %s272
        %s274 = sand.u32 %s76, 1
        %s275 = smul.addr %s274, 8
        %s276 = scalar_lea.vmem [#allocation5], %s275
        // Predicated region
        $region37: #{tpu_custom_call.1} parent=31 // pred_check
          %p277 = pneg %p89
        $region38: #{tpu_custom_call.1} parent=31 // pred_check_branch
          %279 = sbr.rel (%p277) target = $region40
        $region39: #{tpu_custom_call.1} parent=31 // pred_region
          %280 = dma.done %s273, 128
        $region40: #{tpu_custom_call.1} parent=31 // pred_fallthru
          _
        %s281 = sand.u32 %s28, 1
        %s282 = scalar_lea.sflag [#allocation6], %s281
        %s283 = sand.u32 %s104, 1
        %s284 = smul.addr %s283, 8
        %s285 = scalar_lea.vmem [#allocation7], %s284
        // Predicated region
        $region41: #{tpu_custom_call.1} parent=31 // pred_check
          %p286 = pneg %p117
        $region42: #{tpu_custom_call.1} parent=31 // pred_check_branch
          %288 = sbr.rel (%p286) target = $region44
        $region43: #{tpu_custom_call.1} parent=31 // pred_region
          %289 = dma.done %s282, 128
        $region44: #{tpu_custom_call.1} parent=31 // pred_fallthru
          _
        %s290 = sand.u32 %s48, 1
        %s291 = scalar_lea.sflag [#allocation3], %s290
        %s292 = sand.u32 %s48, 1
        %s293 = smul.addr %s292, 4
        %s294 = scalar_lea.vmem [#allocation2], %s293
        %p295 = pneg %p61
        %p296 = pneg %p58
        %s297 = sand.u32 %s28, 1
        %s298 = scalar_lea.sflag [#allocation6], %s297
        %s299 = sand.u32 %s76, 1
        %s300 = smul.addr %s299, 8
        %s301 = scalar_lea.vmem [#allocation5], %s300
        %p302 = pneg %p89
        %p303 = pneg %p86
        %s304 = sand.u32 %s28, 1
        %s305 = scalar_lea.sflag [#allocation6], %s304
        %s306 = sand.u32 %s104, 1
        %s307 = smul.addr %s306, 8
        %s308 = scalar_lea.vmem [#allocation7], %s307
        %p309 = pneg %p117
        %p310 = pneg %p114
        %p311 = pneg %p145
        %p312 = pneg %p142
        %s313 = sand.u32 %s132, 1
        %s314 = scalar_lea.sflag [#allocation4], %s313
        %s315 = sand.u32 %s132, 1
        %s316 = smul.addr %s315, 8
        %s317 = scalar_lea.vmem [#allocation8], %s316
        %p318 = pneg %p173
        %p319 = pneg %p170
        %s320 = sand.u32 %s160, 1
        %s321 = scalar_lea.sflag [#allocation10], %s320
        %s322 = sand.u32 %s160, 1
        %s323 = smul.addr %s322, 8
        %s324 = scalar_lea.vmem [#allocation9], %s323
        %s325 = smul.u32 2, %s32
        %s326 = smul.u32 2, %s32
        %s327 = smul.u32 2, %s32
        %s328 = smul.u32 2, %s32
        %v329 = vld [vmem:[%s267] sm:$0xf]
        %v330 = vld [vmem:[%s276] sm:$0xf]
        %v331 = vld [vmem:[%s276 + $0x4] sm:$0xf]
        %v332 = vmul.f32 %v329, %v330
        %v333 = vmul.f32 %v329, %v331
        %334 = vst [vmem:[%s317] sm:$0xf] %v332
        %335 = vst [vmem:[%s317 + $0x4] sm:$0xf] %v333
        %v336 = vld [vmem:[%s285] sm:$0xf]
        %v337 = vld [vmem:[%s285 + $0x4] sm:$0xf]
        %v338 = vmul.f32 %v329, %v336
        %v339 = vmul.f32 %v329, %v337
        %340 = vst [vmem:[%s324] sm:$0xf] %v338
        %341 = vst [vmem:[%s324 + $0x4] sm:$0xf] %v339
        %s342 = sand.u32 %s132, 1
        %s343 = scalar_lea.sflag [#allocation4], %s342
        %s344 = sand.u32 %s132, 1
        %s345 = smul.addr %s344, 8
        %s346 = scalar_lea.vmem [#allocation8], %s345
        %s347 = sand.u32 %s160, 1
        %s348 = scalar_lea.sflag [#allocation10], %s347
        %s349 = sand.u32 %s160, 1
        %s350 = smul.addr %s349, 8
        %s351 = scalar_lea.vmem [#allocation9], %s350
        // Predicated region
        $region45: #{tpu_custom_call.1} parent=31 // pred_check
          %p352 = pneg %p142
        $region46: #{tpu_custom_call.1} parent=31 // pred_check_branch
          %354 = sbr.rel (%p352) target = $region48
        $region47: #{tpu_custom_call.1} parent=31 // pred_region
          %s355 = smul.u32 2, %s32
          %s357 = ssub.s32 128, 128
          %358 = vsyncadd %s343, %s357
          %s359 = smul.addr %s355, 2
          %s360 = sadd.s32 %s33, %s359
          %s361 = smul.addr %s360, 64
          %s362 = scalar_lea.hbm %s3, %s361
          %s363 = sshll.u32 %s346, 4
          %s364 = int_to_ptr.vmem [resolvable:$true] %s363
          %369 = dma.vmem_to_hbm [thread:$0]  %s364, 128, %s362, %s343, 64, 128, 4
        $region48: #{tpu_custom_call.1} parent=31 // pred_fallthru
          _
        // Predicated region
        $region49: #{tpu_custom_call.1} parent=31 // pred_check
          %p370 = pneg %p170
        $region50: #{tpu_custom_call.1} parent=31 // pred_check_branch
          %372 = sbr.rel (%p370) target = $region52
        $region51: #{tpu_custom_call.1} parent=31 // pred_region
          %s373 = smul.u32 2, %s32
          %s375 = ssub.s32 128, 128
          %376 = vsyncadd %s348, %s375
          %s377 = smul.addr %s373, 2
          %s378 = sadd.s32 %s33, %s377
          %s379 = smul.addr %s378, 64
          %s380 = scalar_lea.hbm %s4, %s379
          %s381 = sshll.u32 %s351, 4
          %s382 = int_to_ptr.vmem [resolvable:$true] %s381
          %387 = dma.vmem_to_hbm [thread:$0]  %s382, 128, %s380, %s348, 64, 128, 4
        $region52: #{tpu_custom_call.1} parent=31 // pred_fallthru
          _
      $region32: #{tpu_custom_call.1} parent=5 // pred_fallthru
        _
      %p388 = scmp.le.s32.totalorder 2, %s23
      // Predicated region
      $region53: #{tpu_custom_call.1} parent=5 // pred_check
        %p389 = pneg %p388
      $region54: #{tpu_custom_call.1} parent=5 // pred_check_branch
        %391 = sbr.rel (%p389) target = $region56
      $region55: #{tpu_custom_call.1} parent=5 // pred_region
        %s392 = ssub.s32 %s23, 2
        // Predicated region
        $region57: #{tpu_custom_call.1} parent=55 // pred_check
          %p393 = pneg %p148
        $region58: #{tpu_custom_call.1} parent=55 // pred_check_branch
          %395 = sbr.rel (%p393) target = $region60
        $region59: #{tpu_custom_call.1} parent=55 // pred_region
          %s396 = sand.u32 %s133, 1
          %s397 = scalar_lea.sflag [#allocation4], %s396
          %s398 = sand.u32 %s133, 1
          %s399 = smul.addr %s398, 8
          %s400 = scalar_lea.vmem [#allocation8], %s399
          %401 = dma.done %s397, 128
        $region60: #{tpu_custom_call.1} parent=55 // pred_fallthru
          _
        // Predicated region
        $region61: #{tpu_custom_call.1} parent=55 // pred_check
          %p402 = pneg %p176
        $region62: #{tpu_custom_call.1} parent=55 // pred_check_branch
          %404 = sbr.rel (%p402) target = $region64
        $region63: #{tpu_custom_call.1} parent=55 // pred_region
          %s405 = sand.u32 %s161, 1
          %s406 = scalar_lea.sflag [#allocation10], %s405
          %s407 = sand.u32 %s161, 1
          %s408 = smul.addr %s407, 8
          %s409 = scalar_lea.vmem [#allocation9], %s408
          %410 = dma.done %s406, 128
        $region64: #{tpu_custom_call.1} parent=55 // pred_fallthru
          _
      $region56: #{tpu_custom_call.1} parent=5 // pred_fallthru
        _
    $region6: #{tpu_custom_call.1} parent=1 // loop_footer
      %s27 = sadd.s32 1, %s23
    $region7: #{tpu_custom_call.1} parent=1 // loop_footer_branch
      %22 = sbr.rel target = $region3
    $region8: #{tpu_custom_call.1} parent=1 // loop_exit
      _
    %411 = vsyncpa [#allocation3], 1
    %s412 = scalar_lea.sflag [#allocation3], 1
    %413 = vsyncpa %s412, 1
    %414 = vsyncpa [#allocation6], 1
    %s415 = scalar_lea.sflag [#allocation6], 1
    %416 = vsyncpa %s415, 1
    %417 = vsyncpa [#allocation4], 1
    %s418 = scalar_lea.sflag [#allocation4], 1
    %419 = vsyncpa %s418, 1
    %420 = vsyncpa [#allocation10], 1
    %s421 = scalar_lea.sflag [#allocation10], 1
    %422 = vsyncpa %s421, 1

</llo_original>
